<compile_context>
chip_gen: v5e
topology: v5e:2x2
jax: 0.10.0
libtpu: 0.0.40
codegen_flags: <defaults>
</compile_context>

<pallas_src>
import numpy as np
import jax
import jax.numpy as jnp
from jax.experimental import pallas as pl
from jax.experimental.pallas import tpu as pltpu


def make_seasonality_basis(harmonics: int, backcast_size: int, forecast_size: int,
                           out_features: int = 1, fused_dtype=jnp.float32):
    """Host-side (numpy), one-time construction — identical math to the PyTorch __init__.

    Returns:
      backcast_basis (2H, Tb)  f32     -- raw template (reference checks)
      forecast_basis (2H, Tf)  f32     -- raw template (reference checks)
      fused_basis    (D, Tb + Tf*Q)    -- zero-padded fused basis consumed by the
                                          kernel, D = 2H*(1+Q), cast to fused_dtype.
    """
    frequency = np.append(
        np.zeros(1, dtype=float),
        np.arange(harmonics, harmonics / 2 * forecast_size, dtype=float) / harmonics,
    )[None, :]
    backcast_grid = (-2 * np.pi
                     * (np.arange(backcast_size, dtype=float)[:, None] / forecast_size)
                     * frequency)
    forecast_grid = (2 * np.pi
                     * (np.arange(forecast_size, dtype=float)[:, None] / forecast_size)
                     * frequency)
    backcast_basis = np.concatenate(
        [np.transpose(np.cos(backcast_grid)), np.transpose(np.sin(backcast_grid))],
        axis=0).astype(np.float32)                                    # (2H, Tb)
    forecast_basis = np.concatenate(
        [np.transpose(np.cos(forecast_grid)), np.transpose(np.sin(forecast_grid))],
        axis=0).astype(np.float32)                                    # (2H, Tf)

    H2, Tb = backcast_basis.shape
    Tf = forecast_basis.shape[1]
    Q = out_features
    D = H2 * (1 + Q)
    fused = np.zeros((D, Tb + Tf * Q), dtype=np.float32)
    fused[:H2, :Tb] = backcast_basis
    fused[H2:, Tb:] = np.kron(forecast_basis, np.eye(Q, dtype=np.float32))
    return (jnp.asarray(backcast_basis),
            jnp.asarray(forecast_basis),
            jnp.asarray(fused).astype(fused_dtype))


def _seasonality_kernel(theta_ref, basis_ref, back_ref, fore_ref):
    # One fused MXU pass per batch tile against the VMEM-resident padded basis.
    acc = jnp.dot(theta_ref[...], basis_ref[...],
                  preferred_element_type=jnp.float32)        # (TB, Tb + Tf*Q)
    tb = back_ref.shape[-1]
    back_ref[...] = acc[:, :tb].astype(back_ref.dtype)
    fore_ref[...] = acc[:, tb:].astype(fore_ref.dtype)


def _pick_batch_tile(B, theta_row_bytes, out_row_bytes, sub_mult,
                     vmem_budget_bytes=16 * 1024 * 1024):
    """Largest sublane-aligned batch tile within budget, with >= 2 grid steps
    whenever the batch is big enough (so the 'parallel' axis can be split across
    v7x's two TensorCores)."""
    row_bytes = 2 * (theta_row_bytes + out_row_bytes)        # double-buffered streams
    tb = vmem_budget_bytes // max(row_bytes, 1)
    tb = int(min(tb, 8192, B))
    if B >= 4 * sub_mult:                                    # cheap on 1-TC chips, ~2x on v7x
        tb = min(tb, -(-B // 2))                             # <= ceil(B/2) -> >= 2 steps
    if tb >= B:
        return B                                             # full-dim block (always legal)
    return max(sub_mult, (tb // sub_mult) * sub_mult)


def seasonality_basis_forward(theta, fused_basis, backcast_size, forecast_size,
                              out_features, *, out_dtype=jnp.float32,
                              batch_tile=None):
    """JAX/Pallas equivalent of SeasonalityBasis.forward.

    theta        : (B, D) with D = 2H*(1 + out_features); f32 or (opt-in) bf16.
    fused_basis  : (D, Tb + Tf*Q) constant from make_seasonality_basis.
    Returns (backcast (B, Tb), forecast (B, Tf, Q)), both in out_dtype.
    """
    B, D = theta.shape
    Tb = backcast_size
    TfQ = forecast_size * out_features
    if fused_basis.shape != (D, Tb + TfQ):
        raise ValueError(f"fused_basis shape {fused_basis.shape} does not match "
                         f"theta width {D} / output widths ({Tb}, {TfQ})")

    cdt = theta.dtype                        # compute dtype follows theta (explicit opt-in)
    basis = fused_basis if fused_basis.dtype == cdt else fused_basis.astype(cdt)

    in_itemsize = jnp.dtype(cdt).itemsize
    out_itemsize = jnp.dtype(out_dtype).itemsize
    sub_mult = 16 if in_itemsize < 4 else 8  # bf16 packs 16 rows per sublane group

    if batch_tile is None:
        TB = _pick_batch_tile(B, D * in_itemsize, (Tb + TfQ) * out_itemsize, sub_mult)
    else:
        TB = int(min(batch_tile, B))
        if TB < B:
            TB = max(sub_mult, (TB // sub_mult) * sub_mult)
    grid = (pl.cdiv(B, TB),)

    flops = 2 * B * D * (Tb + TfQ)
    bytes_accessed = (B * D * in_itemsize                    # theta, read once
                      + B * (Tb + TfQ) * out_itemsize        # outputs
                      + D * (Tb + TfQ) * in_itemsize)        # VMEM-resident fused basis

    back, fore_flat = pl.pallas_call(
        _seasonality_kernel,
        out_shape=(
            jax.ShapeDtypeStruct((B, Tb), out_dtype),
            jax.ShapeDtypeStruct((B, TfQ), out_dtype),
        ),
        grid=grid,
        in_specs=[
            pl.BlockSpec((TB, D), lambda i: (i, 0)),         # streamed theta rows
            pl.BlockSpec((D, Tb + TfQ), lambda i: (0, 0)),   # VMEM-resident fused basis
        ],
        out_specs=(
            pl.BlockSpec((TB, Tb), lambda i: (i, 0)),
            pl.BlockSpec((TB, TfQ), lambda i: (i, 0)),
        ),
        compiler_params=pltpu.CompilerParams(
            dimension_semantics=("parallel",),               # megacore split on v7x
            vmem_limit_bytes=32 * 1024 * 1024,
        ),
        cost_estimate=pl.CostEstimate(
            flops=flops, transcendentals=0, bytes_accessed=bytes_accessed),
    )(theta, basis)

    # (B, Tf*Q) -> (B, Tf, Q): contiguous row-major reshape, no data movement.
    return back, fore_flat.reshape(B, forecast_size, out_features)


if __name__ == "__main__":
    # Small shapes consistent with the module; batch large enough for a
    # multi-step batch grid (auto tile -> 2 steps of 48 rows here).
    harmonics = 2
    backcast_size = 16
    forecast_size = 8
    out_features = 2
    batch = 96

    backcast_basis, forecast_basis, fused_f32 = make_seasonality_basis(
        harmonics, backcast_size, forecast_size, out_features)
    H2 = forecast_basis.shape[0]                 # 2H = 14 for these settings
    theta_dim = H2 * (1 + out_features)          # 42

    key = jax.random.PRNGKey(0)
    theta = jax.random.normal(key, (batch, theta_dim), dtype=jnp.float32)

    # fp32 path, auto-picked batch tile (>= 2 grid steps).
    backcast, forecast = seasonality_basis_forward(
        theta, fused_f32, backcast_size, forecast_size, out_features)
    backcast, forecast = jax.block_until_ready((backcast, forecast))

    # Reference check against plain-JAX einsum (mirrors the PyTorch forward).
    bth = theta[:, :H2]
    fth = theta[:, H2:].reshape(batch, H2, out_features)
    back_ref = jnp.einsum("bp,pt->bt", bth, backcast_basis)
    fore_ref = jnp.einsum("bpq,pt->btq", fth, forecast_basis)

    assert backcast.shape == (batch, backcast_size)
    assert forecast.shape == (batch, forecast_size, out_features)
    np.testing.assert_allclose(np.asarray(backcast), np.asarray(back_ref),
                               rtol=1e-5, atol=1e-5)
    np.testing.assert_allclose(np.asarray(forecast), np.asarray(fore_ref),
                               rtol=1e-5, atol=1e-5)

    # Explicit user tile size (3-step grid), still exact.
    backcast32, forecast32 = seasonality_basis_forward(
        theta, fused_f32, backcast_size, forecast_size, out_features, batch_tile=32)
    backcast32, forecast32 = jax.block_until_ready((backcast32, forecast32))
    np.testing.assert_allclose(np.asarray(backcast32), np.asarray(back_ref),
                               rtol=1e-5, atol=1e-5)
    np.testing.assert_allclose(np.asarray(forecast32), np.asarray(fore_ref),
                               rtol=1e-5, atol=1e-5)

    # Opt-in bf16 path: bf16 theta + bf16 fused basis (halved reads) and bf16
    # outputs (halved writes); fp32 MXU accumulation inside the kernel.
    _, _, fused_bf16 = make_seasonality_basis(
        harmonics, backcast_size, forecast_size, out_features,
        fused_dtype=jnp.bfloat16)
    theta_bf16 = theta.astype(jnp.bfloat16)
    back16, fore16 = seasonality_basis_forward(
        theta_bf16, fused_bf16, backcast_size, forecast_size, out_features,
        out_dtype=jnp.bfloat16)
    back16, fore16 = jax.block_until_ready((back16, fore16))
    np.testing.assert_allclose(np.asarray(back16.astype(jnp.float32)),
                               np.asarray(back_ref), rtol=5e-2, atol=1e-1)
    np.testing.assert_allclose(np.asarray(fore16.astype(jnp.float32)),
                               np.asarray(fore_ref), rtol=5e-2, atol=1e-1)

    print("KERNEL_OK")
</pallas_src>

<mosaic_0001>
module attributes {stable_mosaic.version = 11 : i64} {
  func.func @_seasonality_kernel(%arg0: i32, %arg1: memref<48x42xf32, #tpu.memory_space<vmem>>, %arg2: memref<42x32xf32, #tpu.memory_space<vmem>>, %arg3: memref<48x16xf32, #tpu.memory_space<vmem>>, %arg4: memref<48x16xf32, #tpu.memory_space<vmem>>) attributes {dimension_semantics = [#tpu.dimension_semantics<parallel>], iteration_bounds = array<i64: 2>, scalar_prefetch = 0 : i64, scratch_operands = 0 : i64, tpu.core_type = #tpu.core_type<tc>, window_params = [{transform_indices = @transform_0, window_bounds = array<i64: 48, 42>}, {pipeline_mode = #tpu.pipeline_mode<synchronous>, transform_indices = @transform_1, window_bounds = array<i64: 42, 32>}, {transform_indices = @transform_2, window_bounds = array<i64: 48, 16>}, {transform_indices = @transform_3, window_bounds = array<i64: 48, 16>}]} {
    %c0 = arith.constant 0 : index
    %c0_0 = arith.constant 0 : index
    %0 = vector.load %arg1[%c0, %c0_0] : memref<48x42xf32, #tpu.memory_space<vmem>>, vector<48x42xf32>
    %c0_1 = arith.constant 0 : index
    %c0_2 = arith.constant 0 : index
    %1 = vector.load %arg2[%c0_1, %c0_2] : memref<42x32xf32, #tpu.memory_space<vmem>>, vector<42x32xf32>
    %cst = arith.constant dense<0.000000e+00> : vector<48x32xf32>
    %2 = tpu.matmul %0, %1, %cst {dimension_numbers = #tpu.dot_dimension_numbers<[1], [0], [0], [1], [0, 0, 1, 1], [], []>} : vector<48x42xf32>, vector<42x32xf32>, vector<48x32xf32> -> vector<48x32xf32>
    %3 = vector.extract_strided_slice %2 {offsets = [0, 0], sizes = [48, 16], strides = [1, 1]} : vector<48x32xf32> to vector<48x16xf32>
    %c0_3 = arith.constant 0 : index
    %c0_4 = arith.constant 0 : index
    %4 = vector.load %arg3[%c0_3, %c0_4] : memref<48x16xf32, #tpu.memory_space<vmem>>, vector<48x16xf32>
    tpu.vector_store %arg3[%c0_3, %c0_4], %3 {strides = array<i32>} : memref<48x16xf32, #tpu.memory_space<vmem>>, vector<48x16xf32>,
    %5 = vector.extract_strided_slice %2 {offsets = [0, 16], sizes = [48, 16], strides = [1, 1]} : vector<48x32xf32> to vector<48x16xf32>
    %c0_5 = arith.constant 0 : index
    %c0_6 = arith.constant 0 : index
    %6 = vector.load %arg4[%c0_5, %c0_6] : memref<48x16xf32, #tpu.memory_space<vmem>>, vector<48x16xf32>
    tpu.vector_store %arg4[%c0_5, %c0_6], %5 {strides = array<i32>} : memref<48x16xf32, #tpu.memory_space<vmem>>, vector<48x16xf32>,
    return
  }
  func.func @transform_0(%arg0: i32) -> (i32, i32) {
    %c0_i32 = arith.constant 0 : i32
    %c0_i32_0 = arith.constant 0 : i32
    return %arg0, %c0_i32 : i32, i32
  }
  func.func @transform_1(%arg0: i32) -> (i32, i32) {
    %c0_i32 = arith.constant 0 : i32
    %c0_i32_0 = arith.constant 0 : i32
    %c0_i32_1 = arith.constant 0 : i32
    return %c0_i32, %c0_i32_0 : i32, i32
  }
  func.func @transform_2(%arg0: i32) -> (i32, i32) {
    %c0_i32 = arith.constant 0 : i32
    %c0_i32_0 = arith.constant 0 : i32
    return %arg0, %c0_i32 : i32, i32
  }
  func.func @transform_3(%arg0: i32) -> (i32, i32) {
    %c0_i32 = arith.constant 0 : i32
    %c0_i32_0 = arith.constant 0 : i32
    return %arg0, %c0_i32 : i32, i32
  }
}

</mosaic_0001>

<llo_original>
// kernel: tpu_custom_call.1
$region0: #{tpu_custom_call.1}
  #allocation0 [shape = 'u32[]', space=smem, size = 0x4, offset = 0x4, fixed_abs, tag = 'smem constant byte address 0x4 - core index']
  #allocation1 [shape = 'u32[72,128]{1,0:T(1,128)}', space=vmem, size = 0x9000, scoped, tag = 'internal scratch']
  %s0 = inlined_call_operand.vmem [shape: f32[96,42], index: 0, kind: input, shape index: {}]
  %s1 = inlined_call_operand.vmem [shape: f32[42,32], index: 1, kind: input, shape index: {}]
  %s2 = inlined_call_operand.vmem [shape: f32[96,16], index: 2, kind: output, shape index: {0}]
  %s3 = inlined_call_operand.vmem [shape: f32[96,16], index: 3, kind: output, shape index: {1}]
  %4 = xla_tuple %s2, %s3
  %s5 = sld [smem:[#allocation0]]
  $region49: #{tpu_custom_call.1} parent=0
    _
  %s7 = ssub.s32 1, %s5
  %s8 = scalar_select 0, %s7, %s5
  loop: start=0, step=1, limit=4
  $region2: #{tpu_custom_call.1} parent=0 // loop_pre_header
    _
  $region3: #{tpu_custom_call.1} parent=0 // loop_header
    %s10 = sphi 0, %s14
    %p11 = scmp.ge.s32.totalorder %s10, 4
    %s20 = sphi 0, %s22
    %s23 = sphi 0, %s20
    %s24 = sphi 0, %s23
    %s40 = sphi 0, %s24
    %s44 = sphi 0, %s44
    %s46 = sphi 0, %s44
    %s47 = sphi 0, %s46
    %s61 = sphi 0, %s47
    %s67 = sphi 0, %s69
    %s70 = sphi 0, %s67
    %s71 = sphi 0, %s70
    %s87 = sphi 0, %s71
    %s93 = sphi 0, %s95
    %s96 = sphi 0, %s93
    %s97 = sphi 0, %s96
    %s113 = sphi 0, %s97
  $region4: #{tpu_custom_call.1} parent=0 // loop_header_branch
    %13 = sbr.rel (%p11) target = $region8
  $region5: #{tpu_custom_call.1} parent=0 // loop_body
    %s15 = ssub.s32 %s10, 1
    %s16 = ssub.s32 %s10, 2
    %s17 = sadd.s32 %s10, 1
    %s18 = ssub.s32 %s10, %s17
    %p19 = scmp.eq.s32.totalorder %s18, 0
    %s21 = sadd.s32 %s20, 1
    %s22 = scalar_select %p19, %s20, %s21
    %p25 = pneg %p19
    %p26 = scmp.eq.s32.totalorder %s10, 1
    %p27 = por %p25, %p26
    %p28 = scmp.ne.s32.totalorder %s20, %s23
    %p29 = scmp.eq.s32.totalorder %s10, 0
    %p30 = por %p28, %p29
    %p31 = scmp.ne.s32.totalorder %s20, %s23
    %p32 = scmp.eq.s32.totalorder %s15, 1
    %p33 = por %p31, %p32
    %p34 = scmp.ne.s32.totalorder %s23, %s24
    %p35 = scmp.eq.s32.totalorder %s15, 0
    %p36 = por %p34, %p35
    %p37 = scmp.ne.s32.totalorder %s23, %s24
    %p38 = scmp.eq.s32.totalorder %s16, 1
    %p39 = por %p37, %p38
    %p41 = scmp.ne.s32.totalorder %s24, %s40
    %p42 = scmp.eq.s32.totalorder %s16, 0
    %p43 = por %p41, %p42
    %s45 = sadd.s32 %s44, 1
    %p48 = scmp.eq.s32.totalorder %s10, 1
    %p49 = scmp.ne.s32.totalorder %s44, %s46
    %p50 = scmp.eq.s32.totalorder %s10, 0
    %p51 = por %p49, %p50
    %p52 = scmp.ne.s32.totalorder %s44, %s46
    %p53 = scmp.eq.s32.totalorder %s15, 1
    %p54 = por %p52, %p53
    %p55 = scmp.ne.s32.totalorder %s46, %s47
    %p56 = scmp.eq.s32.totalorder %s15, 0
    %p57 = por %p55, %p56
    %p58 = scmp.ne.s32.totalorder %s46, %s47
    %p59 = scmp.eq.s32.totalorder %s16, 1
    %p60 = por %p58, %p59
    %p62 = scmp.ne.s32.totalorder %s47, %s61
    %p63 = scmp.eq.s32.totalorder %s16, 0
    %p64 = por %p62, %p63
    %s65 = ssub.s32 %s10, %s17
    %p66 = scmp.eq.s32.totalorder %s65, 0
    %s68 = sadd.s32 %s67, 1
    %s69 = scalar_select %p66, %s67, %s68
    %p72 = pneg %p66
    %p73 = scmp.eq.s32.totalorder %s10, 1
    %p74 = por %p72, %p73
    %p75 = scmp.ne.s32.totalorder %s67, %s70
    %p76 = scmp.eq.s32.totalorder %s10, 0
    %p77 = por %p75, %p76
    %p78 = scmp.ne.s32.totalorder %s67, %s70
    %p79 = scmp.eq.s32.totalorder %s15, 1
    %p80 = por %p78, %p79
    %p81 = scmp.ne.s32.totalorder %s70, %s71
    %p82 = scmp.eq.s32.totalorder %s15, 0
    %p83 = por %p81, %p82
    %p84 = scmp.ne.s32.totalorder %s70, %s71
    %p85 = scmp.eq.s32.totalorder %s16, 1
    %p86 = por %p84, %p85
    %p88 = scmp.ne.s32.totalorder %s71, %s87
    %p89 = scmp.eq.s32.totalorder %s16, 0
    %p90 = por %p88, %p89
    %s91 = ssub.s32 %s10, %s17
    %p92 = scmp.eq.s32.totalorder %s91, 0
    %s94 = sadd.s32 %s93, 1
    %s95 = scalar_select %p92, %s93, %s94
    %p98 = pneg %p92
    %p99 = scmp.eq.s32.totalorder %s10, 1
    %p100 = por %p98, %p99
    %p101 = scmp.ne.s32.totalorder %s93, %s96
    %p102 = scmp.eq.s32.totalorder %s10, 0
    %p103 = por %p101, %p102
    %p104 = scmp.ne.s32.totalorder %s93, %s96
    %p105 = scmp.eq.s32.totalorder %s15, 1
    %p106 = por %p104, %p105
    %p107 = scmp.ne.s32.totalorder %s96, %s97
    %p108 = scmp.eq.s32.totalorder %s15, 0
    %p109 = por %p107, %p108
    %p110 = scmp.ne.s32.totalorder %s96, %s97
    %p111 = scmp.eq.s32.totalorder %s16, 1
    %p112 = por %p110, %p111
    %p114 = scmp.ne.s32.totalorder %s97, %s113
    %p115 = scmp.eq.s32.totalorder %s16, 0
    %p116 = por %p114, %p115
    %p117 = scmp.le.s32.totalorder 1, %s10
    %p118 = scmp.lt.s32.totalorder %s10, 3
    %p119 = pnand %p117, %p118
    %p120 = pneg %p119
    // Predicated region
    $region9: #{tpu_custom_call.1} parent=5 // pred_check
      _
    $region10: #{tpu_custom_call.1} parent=5 // pred_check_branch
      %122 = sbr.rel (%p119) target = $region12
    $region11: #{tpu_custom_call.1} parent=5 // pred_region
      %s123 = ssub.s32 %s10, 1
      // Predicated region
      $region13: #{tpu_custom_call.1} parent=11 // pred_check
        %p124 = pneg %p57
      $region14: #{tpu_custom_call.1} parent=11 // pred_check_branch
        %126 = sbr.rel (%p124) target = $region16
      $region15: #{tpu_custom_call.1} parent=11 // pred_region
        _
      $region16: #{tpu_custom_call.1} parent=11 // pred_fallthru
        _
    $region12: #{tpu_custom_call.1} parent=5 // pred_fallthru
      _
    %p127 = scmp.lt.s32.totalorder %s10, 2
    // Predicated region
    $region17: #{tpu_custom_call.1} parent=5 // pred_check
      %p128 = pneg %p127
    $region18: #{tpu_custom_call.1} parent=5 // pred_check_branch
      %130 = sbr.rel (%p128) target = $region20
    $region19: #{tpu_custom_call.1} parent=5 // pred_region
      // Predicated region
      $region21: #{tpu_custom_call.1} parent=19 // pred_check
        %p131 = pneg %p30
      $region22: #{tpu_custom_call.1} parent=19 // pred_check_branch
        %133 = sbr.rel (%p131) target = $region24
      $region23: #{tpu_custom_call.1} parent=19 // pred_region
        %s134 = smul.u32 6, %s10
        %p135 = scmp.lt.s32.totalorder %s134, 11
        %s136 = scalar_select %p135, %s134, 11
        %s137 = smul.addr %s136, 8
        %s138 = scalar_lea.vmem %s0, %s137
        %s139 = smul.u32 6, %s10
      $region24: #{tpu_custom_call.1} parent=19 // pred_fallthru
        _
    $region20: #{tpu_custom_call.1} parent=5 // pred_fallthru
      _
    %p140 = scmp.le.s32.totalorder 1, %s10
    %p141 = scmp.lt.s32.totalorder %s10, 3
    %p142 = pnand %p140, %p141
    %p143 = pneg %p142
    // Predicated region
    $region25: #{tpu_custom_call.1} parent=5 // pred_check
      _
    $region26: #{tpu_custom_call.1} parent=5 // pred_check_branch
      %145 = sbr.rel (%p142) target = $region28
    $region27: #{tpu_custom_call.1} parent=5 // pred_region
      %s146 = ssub.s32 %s10, 1
      %s147 = smul.u32 6, %s15
      %p148 = scmp.lt.s32.totalorder %s147, 11
      %s149 = scalar_select %p148, %s147, 11
      %s150 = smul.addr %s149, 8
      %s151 = scalar_lea.vmem %s0, %s150
      %p152 = pneg %p36
      %p153 = pneg %p33
      %p154 = pneg %p57
      %p155 = pneg %p54
      %p156 = pneg %p83
      %p157 = pneg %p80
      %s158 = smul.u32 6, %s15
      %p159 = scmp.lt.s32.totalorder %s158, 11
      %s160 = scalar_select %p159, %s158, 11
      %s161 = smul.addr %s160, 8
      %s162 = scalar_lea.vmem %s2, %s161
      %p163 = pneg %p109
      %p164 = pneg %p106
      %s165 = smul.u32 6, %s15
      %p166 = scmp.lt.s32.totalorder %s165, 11
      %s167 = scalar_select %p166, %s165, 11
      %s168 = smul.addr %s167, 8
      %s169 = scalar_lea.vmem %s3, %s168
      %s170 = smul.u32 6, %s15
      %p171 = scmp.lt.s32.totalorder %s170, 11
      %s172 = scalar_select %p171, %s170, 11
      %s173 = smul.addr %s172, 8
      %s174 = scalar_lea.vmem %s0, %s173
      %s175 = smul.u32 6, %s15
      %s176 = smul.u32 6, %s15
      %p177 = scmp.lt.s32.totalorder %s176, 11
      %s178 = scalar_select %p177, %s176, 11
      %s179 = smul.addr %s178, 8
      %s180 = scalar_lea.vmem %s2, %s179
      %s181 = smul.u32 6, %s15
      %s182 = smul.u32 6, %s15
      %p183 = scmp.lt.s32.totalorder %s182, 11
      %s184 = scalar_select %p183, %s182, 11
      %s185 = smul.addr %s184, 8
      %s186 = scalar_lea.vmem %s3, %s185
      %s187 = smul.u32 6, %s15
      %v188 = vld [vmem:[%s174] sm:$0xff]
      %v189 = vld [vmem:[%s174 + $0x8] sm:$0xff]
      %v190 = vld [vmem:[%s174 + $0x10] sm:$0xff]
      %v191 = vld [vmem:[%s174 + $0x18] sm:$0xff]
      %v192 = vld [vmem:[%s174 + $0x20] sm:$0xff]
      %v193 = vld [vmem:[%s174 + $0x28] sm:$0xff]
      %v194 = vld [vmem:[%s1] sm:$0xff]
      %v195 = vld [vmem:[%s1 + $0x8] sm:$0xff]
      %v196 = vld [vmem:[%s1 + $0x10] sm:$0xff]
      %v197 = vld [vmem:[%s1 + $0x18] sm:$0xff]
      %v198 = vld [vmem:[%s1 + $0x20] sm:$0xff]
      %v199 = vld [vmem:[%s1 + $0x28] sm:$0x3]
      %vm200 = vcmask 343040
      %v202 = vsel %vm200, %v188, 0
      %v205 = vsel %vm200, %v189, 0
      %v208 = vsel %vm200, %v190, 0
      %v211 = vsel %vm200, %v191, 0
      %v214 = vsel %vm200, %v192, 0
      %v217 = vsel %vm200, %v193, 0
      %vm219 = vcmask 1041408
      %v221 = vsel %vm219, %v199, 0
      %223 = vmatpush.msra.mxu0 0.0
      %224 = vmatpush.msra.mxu0 0.0
      %225 = vmatpush.msra.mxu0 0.0
      %226 = vmatpush.msra.mxu0 0.0
      %227 = vmatpush.msra.mxu0 0.0
      %228 = vmatpush.msra.mxu0 0.0
      %229 = vmatpush.msra.mxu0 0.0
      %230 = vmatpush.msra.mxu0 0.0
      %231 = vmatpush.msra.mxu0 0.0
      %232 = vmatpush.msra.mxu0 0.0
      %233 = vmatpush.msra.mxu0 %v221
      %234 = vmatpush.msra.mxu0 %v198
      %235 = vmatpush.msra.mxu0 %v197
      %236 = vmatpush.msra.mxu0 %v196
      %237 = vmatpush.msra.mxu0 %v195
      %238 = vmatpush.msra.mxu0 %v194
      %239 = vmatmul.f32.gmra.mxu0 %v202
      %v240 = vpop.f32.mrf.mxu0
      %v241 = vadd.f32 0.0, %v240
      %242 = vmatmul.f32.gmra.mxu0 %v205
      %v243 = vpop.f32.mrf.mxu0
      %v244 = vadd.f32 0.0, %v243
      %245 = vmatmul.f32.gmra.mxu0 %v208
      %v246 = vpop.f32.mrf.mxu0
      %v247 = vadd.f32 0.0, %v246
      %248 = vmatmul.f32.gmra.mxu0 %v211
      %v249 = vpop.f32.mrf.mxu0
      %v250 = vadd.f32 0.0, %v249
      %251 = vmatmul.f32.gmra.mxu0 %v214
      %v252 = vpop.f32.mrf.mxu0
      %v253 = vadd.f32 0.0, %v252
      %254 = vmatmul.f32.gmra.mxu0 %v217
      %v255 = vpop.f32.mrf.mxu0
      %v256 = vadd.f32 0.0, %v255
      %257 = vdwg.mxu0
      %vm258 = vcmask 130048
      %259 = vst.msk [vmem:[%s180] sm:$0xff] %vm258, %v241
      %260 = vst.msk [vmem:[%s180 + $0x8] sm:$0xff] %vm258, %v244
      %261 = vst.msk [vmem:[%s180 + $0x10] sm:$0xff] %vm258, %v247
      %262 = vst.msk [vmem:[%s180 + $0x18] sm:$0xff] %vm258, %v250
      %263 = vst.msk [vmem:[%s180 + $0x20] sm:$0xff] %vm258, %v253
      %264 = vst.msk [vmem:[%s180 + $0x28] sm:$0xff] %vm258, %v256
      %271 = vrot.lane.b32.xlu0 %v241, 112
      %v272 = vpop.permute.xlu0 %271
      %273 = vrot.lane.b32.xlu0 %v244, 112
      %v274 = vpop.permute.xlu0 %273
      %275 = vrot.lane.b32.xlu0 %v247, 112
      %v276 = vpop.permute.xlu0 %275
      %277 = vrot.lane.b32.xlu0 %v250, 112
      %v278 = vpop.permute.xlu0 %277
      %279 = vrot.lane.b32.xlu0 %v253, 112
      %v280 = vpop.permute.xlu0 %279
      %281 = vrot.lane.b32.xlu0 %v256, 112
      %v282 = vpop.permute.xlu0 %281
      %289 = vst.msk [vmem:[%s186] sm:$0xff] %vm258, %v272
      %290 = vst.msk [vmem:[%s186 + $0x8] sm:$0xff] %vm258, %v274
      %291 = vst.msk [vmem:[%s186 + $0x10] sm:$0xff] %vm258, %v276
      %292 = vst.msk [vmem:[%s186 + $0x18] sm:$0xff] %vm258, %v278
      %293 = vst.msk [vmem:[%s186 + $0x20] sm:$0xff] %vm258, %v280
      %294 = vst.msk [vmem:[%s186 + $0x28] sm:$0xff] %vm258, %v282
      %s295 = smul.u32 6, %s15
      %p296 = scmp.lt.s32.totalorder %s295, 11
      %s297 = scalar_select %p296, %s295, 11
      %s298 = smul.addr %s297, 8
      %s299 = scalar_lea.vmem %s2, %s298
      %s300 = smul.u32 6, %s15
      %p301 = scmp.lt.s32.totalorder %s300, 11
      %s302 = scalar_select %p301, %s300, 11
      %s303 = smul.addr %s302, 8
      %s304 = scalar_lea.vmem %s3, %s303
      // Predicated region
      $region29: #{tpu_custom_call.1} parent=27 // pred_check
        %p305 = pneg %p80
      $region30: #{tpu_custom_call.1} parent=27 // pred_check_branch
        %307 = sbr.rel (%p305) target = $region32
      $region31: #{tpu_custom_call.1} parent=27 // pred_region
        %s308 = smul.u32 6, %s15
      $region32: #{tpu_custom_call.1} parent=27 // pred_fallthru
        _
      // Predicated region
      $region33: #{tpu_custom_call.1} parent=27 // pred_check
        %p309 = pneg %p106
      $region34: #{tpu_custom_call.1} parent=27 // pred_check_branch
        %311 = sbr.rel (%p309) target = $region36
      $region35: #{tpu_custom_call.1} parent=27 // pred_region
        %s312 = smul.u32 6, %s15
      $region36: #{tpu_custom_call.1} parent=27 // pred_fallthru
        _
    $region28: #{tpu_custom_call.1} parent=5 // pred_fallthru
      _
    %p313 = scmp.le.s32.totalorder 2, %s10
    // Predicated region
    $region37: #{tpu_custom_call.1} parent=5 // pred_check
      %p314 = pneg %p313
    $region38: #{tpu_custom_call.1} parent=5 // pred_check_branch
      %316 = sbr.rel (%p314) target = $region40
    $region39: #{tpu_custom_call.1} parent=5 // pred_region
      %s317 = ssub.s32 %s10, 2
      // Predicated region
      $region41: #{tpu_custom_call.1} parent=39 // pred_check
        %p318 = pneg %p86
      $region42: #{tpu_custom_call.1} parent=39 // pred_check_branch
        %320 = sbr.rel (%p318) target = $region44
      $region43: #{tpu_custom_call.1} parent=39 // pred_region
        %s321 = smul.u32 6, %s16
        %p322 = scmp.lt.s32.totalorder %s321, 11
        %s323 = scalar_select %p322, %s321, 11
        %s324 = smul.addr %s323, 8
        %s325 = scalar_lea.vmem %s2, %s324
      $region44: #{tpu_custom_call.1} parent=39 // pred_fallthru
        _
      // Predicated region
      $region45: #{tpu_custom_call.1} parent=39 // pred_check
        %p326 = pneg %p112
      $region46: #{tpu_custom_call.1} parent=39 // pred_check_branch
        %328 = sbr.rel (%p326) target = $region48
      $region47: #{tpu_custom_call.1} parent=39 // pred_region
        %s329 = smul.u32 6, %s16
        %p330 = scmp.lt.s32.totalorder %s329, 11
        %s331 = scalar_select %p330, %s329, 11
        %s332 = smul.addr %s331, 8
        %s333 = scalar_lea.vmem %s3, %s332
      $region48: #{tpu_custom_call.1} parent=39 // pred_fallthru
        _
    $region40: #{tpu_custom_call.1} parent=5 // pred_fallthru
      _
  $region6: #{tpu_custom_call.1} parent=0 // loop_footer
    %s14 = sadd.s32 1, %s10
  $region7: #{tpu_custom_call.1} parent=0 // loop_footer_branch
    %9 = sbr.rel target = $region3
  $region8: #{tpu_custom_call.1} parent=0 // loop_exit
    _

</llo_original>
